<compile_context>
chip_gen: v7x
topology: tpu7x:2x2x1
jax: 0.10.0
libtpu: 0.0.40
codegen_flags: <defaults>
</compile_context>

<pallas_src>
import functools

import jax
import jax.numpy as jnp
from jax.experimental import pallas as pl
from jax.experimental.pallas import tpu as pltpu

INPUT_SIZE = 6
HIDDEN1 = 128
HIDDEN2 = 64
OUTPUT_SIZE = 2

# 2 * (6*128 + 128*64 + 64*2) MACs per batch row
_FLOPS_PER_ROW = 2 * (INPUT_SIZE * HIDDEN1 + HIDDEN1 * HIDDEN2 + HIDDEN2 * OUTPUT_SIZE)


def _round_up(a, m):
    return ((a + m - 1) // m) * m


def _device_kind():
    try:
        return jax.devices()[0].device_kind.lower()
    except Exception:
        return ""


def mlp_kernel(x_ref, w1_ref, b1_ref, w2_ref, b2_ref, w3_ref, b3_ref, o_ref,
               *, act_dtype):
    # x_ref: (IN, TB) bf16 (batch on lanes); w*: (out, in) bf16 (PyTorch layout);
    # b*: (out, 1) f32.  Dropout layers are identity in eval mode.
    # fc1: bias-add in f32, cast to act_dtype before ReLU (bf16 on v6e/v7x).
    h1 = jnp.dot(w1_ref[...], x_ref[...], preferred_element_type=jnp.float32)
    h1 = jnp.maximum((h1 + b1_ref[...]).astype(act_dtype), 0.0)          # (H1, TB)
    # fc2
    h2 = jnp.dot(w2_ref[...], h1.astype(w2_ref.dtype),
                 preferred_element_type=jnp.float32)
    h2 = jnp.maximum((h2 + b2_ref[...]).astype(act_dtype), 0.0)          # (H2, TB)
    # fc3
    out = jnp.dot(w3_ref[...], h2.astype(w3_ref.dtype),
                  preferred_element_type=jnp.float32) + b3_ref[...]
    o_ref[...] = out.astype(o_ref.dtype)                                 # (OUT, TB)


def _select_tile(B, tb):
    """Pick batch tile TB (multiple of 128) and padded batch Bp."""
    kind = _device_kind()
    is_v5 = "v5" in kind
    is_v7 = "v7" in kind
    if tb is None:
        # v5e scoped-VMEM default is 16 MiB -> cap at 4096; v6e/v7x take 8192.
        tb = 4096 if is_v5 else 8192
    tb = max(128, _round_up(tb, 128))
    if is_v7 and B >= 256:
        # Guarantee >= 2 grid steps so both v7x TensorCores get work.
        tb = min(tb, _round_up((B + 1) // 2, 128))
    if B <= tb:
        TB = _round_up(max(B, 1), 128)
    else:
        TB = tb
    Bp = _round_up(max(B, 1), TB)
    return TB, Bp


def _act_dtype():
    # v5e has no bf16 VALU -> keep f32 ReLU there; bf16 elsewhere.
    return jnp.float32 if "v5" in _device_kind() else jnp.bfloat16


def _mlp_pallas(xt, w1b, b1, w2b, b2, w3b, b3, *, tb, act_dtype):
    """Core pallas_call.  xt: (6, Bp) bf16 with Bp % tb == 0.  Returns (2, Bp) bf16."""
    _, Bp = xt.shape
    grid = (Bp // tb,)

    def const_spec(a):
        nd = a.ndim
        return pl.BlockSpec(a.shape, lambda i, _nd=nd: (0,) * _nd)

    weight_bytes = sum(int(a.size) * a.dtype.itemsize
                       for a in (w1b, b1, w2b, b2, w3b, b3))
    cost = pl.CostEstimate(
        flops=_FLOPS_PER_ROW * Bp,
        transcendentals=0,
        bytes_accessed=Bp * (INPUT_SIZE * 2 + OUTPUT_SIZE * 2) + weight_bytes,
    )

    return pl.pallas_call(
        functools.partial(mlp_kernel, act_dtype=act_dtype),
        out_shape=jax.ShapeDtypeStruct((OUTPUT_SIZE, Bp), jnp.bfloat16),
        grid=grid,
        in_specs=[
            pl.BlockSpec((INPUT_SIZE, tb), lambda i: (0, i)),   # x tile (batch on lanes)
            const_spec(w1b), const_spec(b1),                    # weights/biases resident
            const_spec(w2b), const_spec(b2),
            const_spec(w3b), const_spec(b3),
        ],
        out_specs=pl.BlockSpec((OUTPUT_SIZE, tb), lambda i: (0, i)),
        compiler_params=pltpu.CompilerParams(
            dimension_semantics=("parallel",),                   # megacore on v7x
            # Let XLA fuse the transpose/cast/pad of x into the operand instead
            # of running it as a separate HBM pass.
            allow_input_fusion=[True, False, False, False, False, False, False],
        ),
        cost_estimate=cost,
    )(xt, w1b, b1, w2b, b2, w3b, b3)


def neural_network_forward_feature_major(xt, w1, b1, w2, b2, w3, b3, *, tb=None):
    """Fast path: xt is feature-major (6, B) (bf16 preferred).  Returns (2, B) bf16.

    Use this when the producing layer can keep activations feature-major so no
    wrapper-side transpose/relayout HBM pass is needed at all."""
    assert xt.shape[0] == INPUT_SIZE
    B = xt.shape[1]
    TB, Bp = _select_tile(B, tb)
    xt = xt.astype(jnp.bfloat16)
    if Bp != B:
        xt = jnp.pad(xt, ((0, 0), (0, Bp - B)))
    out = _mlp_pallas(xt,
                      w1.astype(jnp.bfloat16), b1,
                      w2.astype(jnp.bfloat16), b2,
                      w3.astype(jnp.bfloat16), b3,
                      tb=TB, act_dtype=_act_dtype())
    return out[:, :B]


def neural_network_forward(x, w1, b1, w2, b2, w3, b3, *, tb=None):
    """Compatibility path: x is (B, 6) f32 (PyTorch layout).  Returns (B, 2) f32."""
    B = x.shape[0]
    TB, Bp = _select_tile(B, tb)
    # Batch-on-lanes relayout (transpose + cast + pad).  allow_input_fusion on
    # the x operand lets XLA fuse this into the pallas_call instead of emitting
    # a separate un-hidden HBM pass.
    xt = jnp.zeros((INPUT_SIZE, Bp), jnp.bfloat16)
    xt = xt.at[:, :B].set(x.T.astype(jnp.bfloat16))
    out_t = _mlp_pallas(xt,
                        w1.astype(jnp.bfloat16), b1,
                        w2.astype(jnp.bfloat16), b2,
                        w3.astype(jnp.bfloat16), b3,
                        tb=TB, act_dtype=_act_dtype())
    return out_t[:, :B].T.astype(jnp.float32)                   # (B, 2) f32


def init_params(key):
    """Deterministic init mirroring the PyTorch module:
    kaiming_normal_ (fan_in, relu gain) weights in (out, in) layout,
    default nn.Linear uniform biases."""
    ks = jax.random.split(key, 6)

    def kaiming(k, fan_in, fan_out):
        std = (2.0 / fan_in) ** 0.5
        return jax.random.normal(k, (fan_out, fan_in), jnp.float32) * std

    def bias(k, fan_in, fan_out):
        bound = 1.0 / (fan_in ** 0.5)
        return jax.random.uniform(k, (fan_out, 1), jnp.float32, -bound, bound)

    w1 = kaiming(ks[0], INPUT_SIZE, HIDDEN1)
    b1 = bias(ks[1], INPUT_SIZE, HIDDEN1)
    w2 = kaiming(ks[2], HIDDEN1, HIDDEN2)
    b2 = bias(ks[3], HIDDEN1, HIDDEN2)
    w3 = kaiming(ks[4], HIDDEN2, OUTPUT_SIZE)
    b3 = bias(ks[5], HIDDEN2, OUTPUT_SIZE)
    return w1, b1, w2, b2, w3, b3


if __name__ == "__main__":
    key = jax.random.PRNGKey(0)
    k_x, k_p = jax.random.split(key)

    batch = 8
    x = jax.random.normal(k_x, (batch, INPUT_SIZE), jnp.float32)
    params = init_params(k_p)

    # Reference in plain JAX (f32).  Kernel uses bf16 inputs/weights/activations
    # with f32 accumulation, so tolerances are relaxed accordingly.
    w1, b1, w2, b2, w3, b3 = params
    h1 = jnp.maximum(x @ w1.T + b1[:, 0], 0.0)
    h2 = jnp.maximum(h1 @ w2.T + b2[:, 0], 0.0)
    ref = h2 @ w3.T + b3[:, 0]

    # 1) Compatibility path: (B, 6) f32 input, (B, 2) f32 logits.
    out = jax.block_until_ready(neural_network_forward(x, *params))
    assert out.shape == (batch, OUTPUT_SIZE)
    assert jnp.allclose(out, ref, atol=1e-1, rtol=5e-2), (
        f"max abs diff {float(jnp.max(jnp.abs(out - ref)))}")

    # 2) Feature-major fast path: (6, B) bf16 input, (2, B) bf16 output.
    xt = x.T.astype(jnp.bfloat16)
    out_fm = jax.block_until_ready(
        neural_network_forward_feature_major(xt, *params))
    out_fm = out_fm.T.astype(jnp.float32)
    assert out_fm.shape == (batch, OUTPUT_SIZE)
    assert jnp.allclose(out_fm, ref, atol=1e-1, rtol=5e-2), (
        f"max abs diff {float(jnp.max(jnp.abs(out_fm - ref)))}")

    print("KERNEL_OK")
</pallas_src>

<mosaic_0001>
module attributes {stable_mosaic.version = 11 : i64} {
  func.func @mlp_kernel(%arg0: i32, %arg1: memref<6x128xbf16, #tpu.memory_space<vmem>>, %arg2: memref<128x6xbf16, #tpu.memory_space<vmem>>, %arg3: memref<128x1xf32, #tpu.memory_space<vmem>>, %arg4: memref<64x128xbf16, #tpu.memory_space<vmem>>, %arg5: memref<64x1xf32, #tpu.memory_space<vmem>>, %arg6: memref<2x64xbf16, #tpu.memory_space<vmem>>, %arg7: memref<2x1xf32, #tpu.memory_space<vmem>>, %arg8: memref<2x128xbf16, #tpu.memory_space<vmem>>) attributes {dimension_semantics = [#tpu.dimension_semantics<parallel>], iteration_bounds = array<i64: 1>, scalar_prefetch = 0 : i64, scratch_operands = 0 : i64, tpu.core_type = #tpu.core_type<tc>, window_params = [{transform_indices = @transform_0, window_bounds = array<i64: 6, 128>}, {pipeline_mode = #tpu.pipeline_mode<synchronous>, transform_indices = @transform_1, window_bounds = array<i64: 128, 6>}, {pipeline_mode = #tpu.pipeline_mode<synchronous>, transform_indices = @transform_2, window_bounds = array<i64: 128, 1>}, {pipeline_mode = #tpu.pipeline_mode<synchronous>, transform_indices = @transform_3, window_bounds = array<i64: 64, 128>}, {pipeline_mode = #tpu.pipeline_mode<synchronous>, transform_indices = @transform_4, window_bounds = array<i64: 64, 1>}, {pipeline_mode = #tpu.pipeline_mode<synchronous>, transform_indices = @transform_5, window_bounds = array<i64: 2, 64>}, {pipeline_mode = #tpu.pipeline_mode<synchronous>, transform_indices = @transform_6, window_bounds = array<i64: 2, 1>}, {transform_indices = @transform_7, window_bounds = array<i64: 2, 128>}]} {
    %c0 = arith.constant 0 : index
    %c0_0 = arith.constant 0 : index
    %0 = vector.load %arg2[%c0, %c0_0] : memref<128x6xbf16, #tpu.memory_space<vmem>>, vector<128x6xbf16>
    %c0_1 = arith.constant 0 : index
    %c0_2 = arith.constant 0 : index
    %1 = vector.load %arg1[%c0_1, %c0_2] : memref<6x128xbf16, #tpu.memory_space<vmem>>, vector<6x128xbf16>
    %cst = arith.constant dense<0.000000e+00> : vector<128x128xf32>
    %2 = tpu.matmul %0, %1, %cst {dimension_numbers = #tpu.dot_dimension_numbers<[1], [0], [0], [1], [0, 0, 1, 1], [], []>} : vector<128x6xbf16>, vector<6x128xbf16>, vector<128x128xf32> -> vector<128x128xf32>
    %c0_3 = arith.constant 0 : index
    %c0_4 = arith.constant 0 : index
    %3 = vector.load %arg3[%c0_3, %c0_4] : memref<128x1xf32, #tpu.memory_space<vmem>>, vector<128x1xf32>
    %4 = vector.broadcast %3 : vector<128x1xf32> to vector<128x128xf32>
    %5 = arith.addf %2, %4 : vector<128x128xf32>
    %6 = arith.truncf %5 : vector<128x128xf32> to vector<128x128xbf16>
    %cst_5 = arith.constant 0.000000e+00 : bf16
    %7 = vector.broadcast %cst_5 : bf16 to vector<128x128xbf16>
    %8 = arith.maximumf %6, %7 : vector<128x128xbf16>
    %c0_6 = arith.constant 0 : index
    %c0_7 = arith.constant 0 : index
    %9 = vector.load %arg4[%c0_6, %c0_7] : memref<64x128xbf16, #tpu.memory_space<vmem>>, vector<64x128xbf16>
    %cst_8 = arith.constant dense<0.000000e+00> : vector<64x128xf32>
    %10 = tpu.matmul %9, %8, %cst_8 {dimension_numbers = #tpu.dot_dimension_numbers<[1], [0], [0], [1], [0, 0, 1, 1], [], []>} : vector<64x128xbf16>, vector<128x128xbf16>, vector<64x128xf32> -> vector<64x128xf32>
    %c0_9 = arith.constant 0 : index
    %c0_10 = arith.constant 0 : index
    %11 = vector.load %arg5[%c0_9, %c0_10] : memref<64x1xf32, #tpu.memory_space<vmem>>, vector<64x1xf32>
    %12 = vector.broadcast %11 : vector<64x1xf32> to vector<64x128xf32>
    %13 = arith.addf %10, %12 : vector<64x128xf32>
    %14 = arith.truncf %13 : vector<64x128xf32> to vector<64x128xbf16>
    %cst_11 = arith.constant 0.000000e+00 : bf16
    %15 = vector.broadcast %cst_11 : bf16 to vector<64x128xbf16>
    %16 = arith.maximumf %14, %15 : vector<64x128xbf16>
    %c0_12 = arith.constant 0 : index
    %c0_13 = arith.constant 0 : index
    %17 = vector.load %arg6[%c0_12, %c0_13] : memref<2x64xbf16, #tpu.memory_space<vmem>>, vector<2x64xbf16>
    %cst_14 = arith.constant dense<0.000000e+00> : vector<2x128xf32>
    %18 = tpu.matmul %17, %16, %cst_14 {dimension_numbers = #tpu.dot_dimension_numbers<[1], [0], [0], [1], [0, 0, 1, 1], [], []>} : vector<2x64xbf16>, vector<64x128xbf16>, vector<2x128xf32> -> vector<2x128xf32>
    %c0_15 = arith.constant 0 : index
    %c0_16 = arith.constant 0 : index
    %19 = vector.load %arg7[%c0_15, %c0_16] : memref<2x1xf32, #tpu.memory_space<vmem>>, vector<2x1xf32>
    %20 = vector.broadcast %19 : vector<2x1xf32> to vector<2x128xf32>
    %21 = arith.addf %18, %20 : vector<2x128xf32>
    %22 = arith.truncf %21 : vector<2x128xf32> to vector<2x128xbf16>
    %c0_17 = arith.constant 0 : index
    %c0_18 = arith.constant 0 : index
    %23 = vector.load %arg8[%c0_17, %c0_18] : memref<2x128xbf16, #tpu.memory_space<vmem>>, vector<2x128xbf16>
    tpu.vector_store %arg8[%c0_17, %c0_18], %22 {strides = array<i32>} : memref<2x128xbf16, #tpu.memory_space<vmem>>, vector<2x128xbf16>,
    return
  }
  func.func @transform_0(%arg0: i32) -> (i32, i32) {
    %c0_i32 = arith.constant 0 : i32
    %c0_i32_0 = arith.constant 0 : i32
    return %c0_i32, %arg0 : i32, i32
  }
  func.func @transform_1(%arg0: i32) -> (i32, i32) {
    %c0_i32 = arith.constant 0 : i32
    %c0_i32_0 = arith.constant 0 : i32
    %c0_i32_1 = arith.constant 0 : i32
    return %c0_i32, %c0_i32_0 : i32, i32
  }
  func.func @transform_2(%arg0: i32) -> (i32, i32) {
    %c0_i32 = arith.constant 0 : i32
    %c0_i32_0 = arith.constant 0 : i32
    %c0_i32_1 = arith.constant 0 : i32
    return %c0_i32, %c0_i32_0 : i32, i32
  }
  func.func @transform_3(%arg0: i32) -> (i32, i32) {
    %c0_i32 = arith.constant 0 : i32
    %c0_i32_0 = arith.constant 0 : i32
    %c0_i32_1 = arith.constant 0 : i32
    return %c0_i32, %c0_i32_0 : i32, i32
  }
  func.func @transform_4(%arg0: i32) -> (i32, i32) {
    %c0_i32 = arith.constant 0 : i32
    %c0_i32_0 = arith.constant 0 : i32
    %c0_i32_1 = arith.constant 0 : i32
    return %c0_i32, %c0_i32_0 : i32, i32
  }
  func.func @transform_5(%arg0: i32) -> (i32, i32) {
    %c0_i32 = arith.constant 0 : i32
    %c0_i32_0 = arith.constant 0 : i32
    %c0_i32_1 = arith.constant 0 : i32
    return %c0_i32, %c0_i32_0 : i32, i32
  }
  func.func @transform_6(%arg0: i32) -> (i32, i32) {
    %c0_i32 = arith.constant 0 : i32
    %c0_i32_0 = arith.constant 0 : i32
    %c0_i32_1 = arith.constant 0 : i32
    return %c0_i32, %c0_i32_0 : i32, i32
  }
  func.func @transform_7(%arg0: i32) -> (i32, i32) {
    %c0_i32 = arith.constant 0 : i32
    %c0_i32_0 = arith.constant 0 : i32
    return %c0_i32, %arg0 : i32, i32
  }
}

</mosaic_0001>

<llo_original>
// kernel: tpu_custom_call.1
$region0: #{tpu_custom_call.1}
  #allocation0 [shape = 'u32[]', space=smem, size = 0x4, offset = 0x4, fixed_abs, tag = 'smem constant byte address 0x4 - core index']
  #allocation1 [shape = 'u32[144,128]{1,0:T(1,128)}', space=vmem, size = 0x12000, scoped, tag = 'internal scratch']
  %s0 = inlined_call_operand.vmem [shape: bf16[6,128], index: 0, kind: input, shape index: {}]
  %s1 = inlined_call_operand.vmem [shape: bf16[128,6], index: 1, kind: input, shape index: {}]
  %s2 = inlined_call_operand.vmem [shape: f32[128,1], index: 2, kind: input, shape index: {}]
  %s3 = inlined_call_operand.vmem [shape: bf16[64,128], index: 3, kind: input, shape index: {}]
  %s4 = inlined_call_operand.vmem [shape: f32[64,1], index: 4, kind: input, shape index: {}]
  %s5 = inlined_call_operand.vmem [shape: bf16[2,64], index: 5, kind: input, shape index: {}]
  %s6 = inlined_call_operand.vmem [shape: f32[2,1], index: 6, kind: input, shape index: {}]
  %s7 = inlined_call_operand.hbm [shape: bf16[2,128], index: 7, kind: output, shape index: {}]
  %s8 = sld [smem:[#allocation0]]
  $region38: #{tpu_custom_call.1} parent=0
    _
  %s10 = ssub.s32 1, %s8
  %s11 = scalar_select 0, %s10, %s8
  $region1: #{tpu_custom_call.1} parent=0
    #allocation2 [shape = 'u8[512]{0}', space=vmem, size = 0x400, scoped, tag = 'output window, operand 0, single buffered']
    #allocation3 [shape = 's32[1]{0}', space=sflag, size = 0x4, scoped, tag = 'scoped memory for tpu_custom_call.1']
    %12 = vsyncpa [#allocation3], 0
    // Predicated region
    $region2: #{tpu_custom_call.1} parent=1 // pred_check
      _
    $region3: #{tpu_custom_call.1} parent=1 // pred_check_branch
      %14 = sbr.rel (0) target = $region5
    $region4: #{tpu_custom_call.1} parent=1 // pred_region
      _
    $region5: #{tpu_custom_call.1} parent=1 // pred_fallthru
      _
    // Predicated region
    $region6: #{tpu_custom_call.1} parent=1 // pred_check
      _
    $region7: #{tpu_custom_call.1} parent=1 // pred_check_branch
      %16 = sbr.rel (0) target = $region9
    $region8: #{tpu_custom_call.1} parent=1 // pred_region
      _
    $region9: #{tpu_custom_call.1} parent=1 // pred_fallthru
      _
    // Predicated region
    $region10: #{tpu_custom_call.1} parent=1 // pred_check
      _
    $region11: #{tpu_custom_call.1} parent=1 // pred_check_branch
      %18 = sbr.rel (0) target = $region13
    $region12: #{tpu_custom_call.1} parent=1 // pred_region
      _
    $region13: #{tpu_custom_call.1} parent=1 // pred_fallthru
      _
    // Predicated region
    $region14: #{tpu_custom_call.1} parent=1 // pred_check
      _
    $region15: #{tpu_custom_call.1} parent=1 // pred_check_branch
      %20 = sbr.rel (0) target = $region17
    $region16: #{tpu_custom_call.1} parent=1 // pred_region
      _
    $region17: #{tpu_custom_call.1} parent=1 // pred_fallthru
      _
    // Predicated region
    $region18: #{tpu_custom_call.1} parent=1 // pred_check
      _
    $region19: #{tpu_custom_call.1} parent=1 // pred_check_branch
      %22 = sbr.rel (0) target = $region21
    $region20: #{tpu_custom_call.1} parent=1 // pred_region
      _
    $region21: #{tpu_custom_call.1} parent=1 // pred_fallthru
      _
    // Predicated region
    $region22: #{tpu_custom_call.1} parent=1 // pred_check
      _
    $region23: #{tpu_custom_call.1} parent=1 // pred_check_branch
      %24 = sbr.rel (0) target = $region25
    $region24: #{tpu_custom_call.1} parent=1 // pred_region
      _
    $region25: #{tpu_custom_call.1} parent=1 // pred_fallthru
      _
    // Predicated region
    $region26: #{tpu_custom_call.1} parent=1 // pred_check
      _
    $region27: #{tpu_custom_call.1} parent=1 // pred_check_branch
      %26 = sbr.rel (0) target = $region29
    $region28: #{tpu_custom_call.1} parent=1 // pred_region
      _
    $region29: #{tpu_custom_call.1} parent=1 // pred_fallthru
      _
    %v28 = vld [vmem:[%s1] sm:$0xf]
    %v29 = vld [vmem:[%s1 + $0x4] sm:$0xf]
    %v30 = vld [vmem:[%s1 + $0x8] sm:$0xf]
    %v31 = vld [vmem:[%s1 + $0xc] sm:$0xf]
    %v32 = vld [vmem:[%s1 + $0x10] sm:$0xf]
    %v33 = vld [vmem:[%s1 + $0x14] sm:$0xf]
    %v34 = vld [vmem:[%s1 + $0x18] sm:$0xf]
    %v35 = vld [vmem:[%s1 + $0x1c] sm:$0xf]
    %v36 = vld [vmem:[%s1 + $0x20] sm:$0xf]
    %v37 = vld [vmem:[%s1 + $0x24] sm:$0xf]
    %v38 = vld [vmem:[%s1 + $0x28] sm:$0xf]
    %v39 = vld [vmem:[%s1 + $0x2c] sm:$0xf]
    %v40 = vld [vmem:[%s1 + $0x30] sm:$0xf]
    %v41 = vld [vmem:[%s1 + $0x34] sm:$0xf]
    %v42 = vld [vmem:[%s1 + $0x38] sm:$0xf]
    %v43 = vld [vmem:[%s1 + $0x3c] sm:$0xf]
    %v44 = vld [vmem:[%s0] sm:$0x7]
    %v45 = vld [vmem:[%s2] sm:$0xff]
    %v46 = vld [vmem:[%s2 + $0x8] sm:$0xff]
    %v47 = vld [vmem:[%s2 + $0x10] sm:$0xff]
    %v48 = vld [vmem:[%s2 + $0x18] sm:$0xff]
    %v49 = vld [vmem:[%s2 + $0x20] sm:$0xff]
    %v50 = vld [vmem:[%s2 + $0x28] sm:$0xff]
    %v51 = vld [vmem:[%s2 + $0x30] sm:$0xff]
    %v52 = vld [vmem:[%s2 + $0x38] sm:$0xff]
    %v53 = vld [vmem:[%s2 + $0x40] sm:$0xff]
    %v54 = vld [vmem:[%s2 + $0x48] sm:$0xff]
    %v55 = vld [vmem:[%s2 + $0x50] sm:$0xff]
    %v56 = vld [vmem:[%s2 + $0x58] sm:$0xff]
    %v57 = vld [vmem:[%s2 + $0x60] sm:$0xff]
    %v58 = vld [vmem:[%s2 + $0x68] sm:$0xff]
    %v59 = vld [vmem:[%s2 + $0x70] sm:$0xff]
    %v60 = vld [vmem:[%s2 + $0x78] sm:$0xff]
    %62 = vset.pattern.permute.xlu0 0
    %63 = vperm.xlu0 %62, %v45
    %v64 = vpop.permute.xlu0 %63
    %67 = vset.pattern.permute.xlu0 0
    %68 = vperm.xlu0 %67, %v46
    %v69 = vpop.permute.xlu0 %68
    %72 = vset.pattern.permute.xlu0 0
    %73 = vperm.xlu0 %72, %v47
    %v74 = vpop.permute.xlu0 %73
    %77 = vset.pattern.permute.xlu0 0
    %78 = vperm.xlu0 %77, %v48
    %v79 = vpop.permute.xlu0 %78
    %82 = vset.pattern.permute.xlu0 0
    %83 = vperm.xlu0 %82, %v49
    %v84 = vpop.permute.xlu0 %83
    %87 = vset.pattern.permute.xlu0 0
    %88 = vperm.xlu0 %87, %v50
    %v89 = vpop.permute.xlu0 %88
    %92 = vset.pattern.permute.xlu0 0
    %93 = vperm.xlu0 %92, %v51
    %v94 = vpop.permute.xlu0 %93
    %97 = vset.pattern.permute.xlu0 0
    %98 = vperm.xlu0 %97, %v52
    %v99 = vpop.permute.xlu0 %98
    %102 = vset.pattern.permute.xlu0 0
    %103 = vperm.xlu0 %102, %v53
    %v104 = vpop.permute.xlu0 %103
    %107 = vset.pattern.permute.xlu0 0
    %108 = vperm.xlu0 %107, %v54
    %v109 = vpop.permute.xlu0 %108
    %112 = vset.pattern.permute.xlu0 0
    %113 = vperm.xlu0 %112, %v55
    %v114 = vpop.permute.xlu0 %113
    %117 = vset.pattern.permute.xlu0 0
    %118 = vperm.xlu0 %117, %v56
    %v119 = vpop.permute.xlu0 %118
    %122 = vset.pattern.permute.xlu0 0
    %123 = vperm.xlu0 %122, %v57
    %v124 = vpop.permute.xlu0 %123
    %127 = vset.pattern.permute.xlu0 0
    %128 = vperm.xlu0 %127, %v58
    %v129 = vpop.permute.xlu0 %128
    %132 = vset.pattern.permute.xlu0 0
    %133 = vperm.xlu0 %132, %v59
    %v134 = vpop.permute.xlu0 %133
    %137 = vset.pattern.permute.xlu0 0
    %138 = vperm.xlu0 %137, %v60
    %v139 = vpop.permute.xlu0 %138
    %v157 = vunpack.c.l.b16 %v28
    %v158 = vunpack.c.l.b16 %v29
    %v159 = vunpack.c.l.b16 %v30
    %v160 = vunpack.c.l.b16 %v31
    %v161 = vunpack.c.l.b16 %v32
    %v162 = vunpack.c.l.b16 %v33
    %v163 = vunpack.c.l.b16 %v34
    %v164 = vunpack.c.l.b16 %v35
    %v165 = vunpack.c.l.b16 %v36
    %v166 = vunpack.c.l.b16 %v37
    %v167 = vunpack.c.l.b16 %v38
    %v168 = vunpack.c.l.b16 %v39
    %v169 = vunpack.c.l.b16 %v40
    %v170 = vunpack.c.l.b16 %v41
    %v171 = vunpack.c.l.b16 %v42
    %v172 = vunpack.c.l.b16 %v43
    %v173 = vpack.c.b16 %v158, %v157
    %v174 = vpack.c.b16 %v160, %v159
    %v175 = vpack.c.b16 %v162, %v161
    %v176 = vpack.c.b16 %v164, %v163
    %v177 = vpack.c.b16 %v166, %v165
    %v178 = vpack.c.b16 %v168, %v167
    %v179 = vpack.c.b16 %v170, %v169
    %v180 = vpack.c.b16 %v172, %v171
    %vm181 = vcmask 48128
    %v183 = vsel %vm181, %v173, 0
    %v186 = vsel %vm181, %v174, 0
    %v189 = vsel %vm181, %v175, 0
    %v192 = vsel %vm181, %v176, 0
    %v195 = vsel %vm181, %v177, 0
    %v198 = vsel %vm181, %v178, 0
    %v201 = vsel %vm181, %v179, 0
    %v204 = vsel %vm181, %v180, 0
    %vm206 = vcmask 1042432
    %v208 = vsel %vm206, %v44, 0
    %210 = vmatprep.subr.bf16.mxu0 0
    %211 = vmatpush1.bf16.msra.mxu0 %v208
    %212 = vmatprep.subr.bf16.mxu0 0
    %213 = vmatpush1.bf16.msra.mxu0 0
    %214 = vmatprep.subr.bf16.mxu0 0
    %215 = vmatpush1.bf16.msra.mxu0 0
    %216 = vmatprep.subr.bf16.mxu0 0
    %217 = vmatpush1.bf16.msra.mxu0 0
    %218 = vmatprep.subr.bf16.mxu0 0
    %219 = vmatpush1.bf16.msra.mxu0 0
    %220 = vmatprep.subr.bf16.mxu0 0
    %221 = vmatpush1.bf16.msra.mxu0 0
    %222 = vmatprep.subr.bf16.mxu0 0
    %223 = vmatpush1.bf16.msra.mxu0 0
    %224 = vmatprep.subr.bf16.mxu0 0
    %225 = vmatpush1.bf16.msra.mxu0 0
    %226 = vmatprep.subr.bf16.mxu0 0
    %227 = vmatpush1.bf16.msra.mxu0 0
    %228 = vmatprep.subr.bf16.mxu0 0
    %229 = vmatpush1.bf16.msra.mxu0 0
    %230 = vmatprep.subr.bf16.mxu0 0
    %231 = vmatpush1.bf16.msra.mxu0 0
    %232 = vmatprep.subr.bf16.mxu0 0
    %233 = vmatpush1.bf16.msra.mxu0 0
    %234 = vmatprep.subr.bf16.mxu0 0
    %235 = vmatpush1.bf16.msra.mxu0 0
    %236 = vmatprep.subr.bf16.mxu0 0
    %237 = vmatpush1.bf16.msra.mxu0 0
    %238 = vmatprep.subr.bf16.mxu0 0
    %239 = vmatpush1.bf16.msra.mxu0 0
    %240 = vmatprep.subr.bf16.mxu0 0
    %241 = vmatpush1.bf16.msra.mxu0 0
    %242 = vmatprep.mubr.bf16.mxu0 0
    %243 = vmatmul.mubr.bf16.gmra.mrb[0].mxu0 %v183
    %v244 = vpop.f32.mrb[0].mxu0
    %v245 = vadd.f32 %v64, %v244
    %v246 = vpop.f32.mrb[0].mxu0
    %v247 = vpop.f32.mrb[0].mxu0
    %v248 = vadd.f32 %v69, %v247
    %v249 = vpop.f32.mrb[0].mxu0
    %250 = vmatprep.mubr.bf16.mxu0 0
    %251 = vmatmul.mubr.bf16.gmra.mrb[0].mxu0 %v186
    %v252 = vpop.f32.mrb[0].mxu0
    %v253 = vadd.f32 %v74, %v252
    %v254 = vpop.f32.mrb[0].mxu0
    %v255 = vpop.f32.mrb[0].mxu0
    %v256 = vadd.f32 %v79, %v255
    %v257 = vpop.f32.mrb[0].mxu0
    %258 = vmatprep.mubr.bf16.mxu0 0
    %259 = vmatmul.mubr.bf16.gmra.mrb[0].mxu0 %v189
    %v260 = vpop.f32.mrb[0].mxu0
    %v261 = vadd.f32 %v84, %v260
    %v262 = vpop.f32.mrb[0].mxu0
    %v263 = vpop.f32.mrb[0].mxu0
    %v264 = vadd.f32 %v89, %v263
    %v265 = vpop.f32.mrb[0].mxu0
    %266 = vmatprep.mubr.bf16.mxu0 0
    %267 = vmatmul.mubr.bf16.gmra.mrb[0].mxu0 %v192
    %v268 = vpop.f32.mrb[0].mxu0
    %v269 = vadd.f32 %v94, %v268
    %v270 = vpop.f32.mrb[0].mxu0
    %v271 = vpop.f32.mrb[0].mxu0
    %v272 = vadd.f32 %v99, %v271
    %v273 = vpop.f32.mrb[0].mxu0
    %274 = vmatprep.mubr.bf16.mxu0 0
    %275 = vmatmul.mubr.bf16.gmra.mrb[0].mxu0 %v195
    %v276 = vpop.f32.mrb[0].mxu0
    %v277 = vadd.f32 %v104, %v276
    %v278 = vpop.f32.mrb[0].mxu0
    %v279 = vpop.f32.mrb[0].mxu0
    %v280 = vadd.f32 %v109, %v279
    %v281 = vpop.f32.mrb[0].mxu0
    %282 = vmatprep.mubr.bf16.mxu0 0
    %283 = vmatmul.mubr.bf16.gmra.mrb[0].mxu0 %v198
    %v284 = vpop.f32.mrb[0].mxu0
    %v285 = vadd.f32 %v114, %v284
    %v286 = vpop.f32.mrb[0].mxu0
    %v287 = vpop.f32.mrb[0].mxu0
    %v288 = vadd.f32 %v119, %v287
    %v289 = vpop.f32.mrb[0].mxu0
    %290 = vmatprep.mubr.bf16.mxu0 0
    %291 = vmatmul.mubr.bf16.gmra.mrb[0].mxu0 %v201
    %v292 = vpop.f32.mrb[0].mxu0
    %v293 = vadd.f32 %v124, %v292
    %v294 = vpop.f32.mrb[0].mxu0
    %v295 = vpop.f32.mrb[0].mxu0
    %v296 = vadd.f32 %v129, %v295
    %v297 = vpop.f32.mrb[0].mxu0
    %298 = vmatprep.mubr.bf16.mxu0 0
    %299 = vmatmul.mubr.bf16.gmra.mrb[0].mxu0 %v204
    %v300 = vpop.f32.mrb[0].mxu0
    %v301 = vadd.f32 %v134, %v300
    %v302 = vpop.f32.mrb[0].mxu0
    %v303 = vpop.f32.mrb[0].mxu0
    %v304 = vadd.f32 %v139, %v303
    %v305 = vpop.f32.mrb[0].mxu0
    %306 = vdwg.mxu0
    %v307 = vpack.c.bf16 %v248, %v245
    %v308 = vpack.c.bf16 %v256, %v253
    %v309 = vpack.c.bf16 %v264, %v261
    %v310 = vpack.c.bf16 %v272, %v269
    %v311 = vpack.c.bf16 %v280, %v277
    %v312 = vpack.c.bf16 %v288, %v285
    %v313 = vpack.c.bf16 %v296, %v293
    %v314 = vpack.c.bf16 %v304, %v301
    %v315 = vmax.bf16 %v307, 0
    %v316 = vmax.bf16 %v308, 0
    %v317 = vmax.bf16 %v309, 0
    %v318 = vmax.bf16 %v310, 0
    %v319 = vmax.bf16 %v311, 0
    %v320 = vmax.bf16 %v312, 0
    %v321 = vmax.bf16 %v313, 0
    %v322 = vmax.bf16 %v314, 0
    %v323 = vld [vmem:[%s3] sm:$0xf]
    %v324 = vld [vmem:[%s3 + $0x4] sm:$0xf]
    %v325 = vld [vmem:[%s3 + $0x8] sm:$0xf]
    %v326 = vld [vmem:[%s3 + $0xc] sm:$0xf]
    %v327 = vld [vmem:[%s3 + $0x10] sm:$0xf]
    %v328 = vld [vmem:[%s3 + $0x14] sm:$0xf]
    %v329 = vld [vmem:[%s3 + $0x18] sm:$0xf]
    %v330 = vld [vmem:[%s3 + $0x1c] sm:$0xf]
    %v331 = vld [vmem:[%s4] sm:$0xff]
    %v332 = vld [vmem:[%s4 + $0x8] sm:$0xff]
    %v333 = vld [vmem:[%s4 + $0x10] sm:$0xff]
    %v334 = vld [vmem:[%s4 + $0x18] sm:$0xff]
    %v335 = vld [vmem:[%s4 + $0x20] sm:$0xff]
    %v336 = vld [vmem:[%s4 + $0x28] sm:$0xff]
    %v337 = vld [vmem:[%s4 + $0x30] sm:$0xff]
    %v338 = vld [vmem:[%s4 + $0x38] sm:$0xff]
    %340 = vset.pattern.permute.xlu0 0
    %341 = vperm.xlu0 %340, %v331
    %v342 = vpop.permute.xlu0 %341
    %345 = vset.pattern.permute.xlu0 0
    %346 = vperm.xlu0 %345, %v332
    %v347 = vpop.permute.xlu0 %346
    %350 = vset.pattern.permute.xlu0 0
    %351 = vperm.xlu0 %350, %v333
    %v352 = vpop.permute.xlu0 %351
    %355 = vset.pattern.permute.xlu0 0
    %356 = vperm.xlu0 %355, %v334
    %v357 = vpop.permute.xlu0 %356
    %360 = vset.pattern.permute.xlu0 0
    %361 = vperm.xlu0 %360, %v335
    %v362 = vpop.permute.xlu0 %361
    %365 = vset.pattern.permute.xlu0 0
    %366 = vperm.xlu0 %365, %v336
    %v367 = vpop.permute.xlu0 %366
    %370 = vset.pattern.permute.xlu0 0
    %371 = vperm.xlu0 %370, %v337
    %v372 = vpop.permute.xlu0 %371
    %375 = vset.pattern.permute.xlu0 0
    %376 = vperm.xlu0 %375, %v338
    %v377 = vpop.permute.xlu0 %376
    %v387 = vunpack.c.l.b16 %v323
    %v388 = vunpack.c.l.b16 %v324
    %v389 = vunpack.c.l.b16 %v325
    %v390 = vunpack.c.l.b16 %v326
    %v391 = vunpack.c.l.b16 %v327
    %v392 = vunpack.c.l.b16 %v328
    %v393 = vunpack.c.l.b16 %v329
    %v394 = vunpack.c.l.b16 %v330
    %v395 = vpack.c.b16 %v388, %v387
    %v396 = vpack.c.b16 %v390, %v389
    %v397 = vpack.c.b16 %v392, %v391
    %v398 = vpack.c.b16 %v394, %v393
    %403 = vmatprep.subr.bf16.mxu0 0
    %404 = vmatpush1.bf16.msra.mxu0 %v315
    %405 = vmatprep.subr.bf16.mxu0 0
    %406 = vmatpush1.bf16.msra.mxu0 %v316
    %407 = vmatprep.subr.bf16.mxu0 0
    %408 = vmatpush1.bf16.msra.mxu0 %v317
    %409 = vmatprep.subr.bf16.mxu0 0
    %410 = vmatpush1.bf16.msra.mxu0 %v318
    %411 = vmatprep.subr.bf16.mxu0 0
    %412 = vmatpush1.bf16.msra.mxu0 %v319
    %413 = vmatprep.subr.bf16.mxu0 0
    %414 = vmatpush1.bf16.msra.mxu0 %v320
    %415 = vmatprep.subr.bf16.mxu0 0
    %416 = vmatpush1.bf16.msra.mxu0 %v321
    %417 = vmatprep.subr.bf16.mxu0 0
    %418 = vmatpush1.bf16.msra.mxu0 %v322
    %419 = vmatprep.subr.bf16.mxu0 0
    %420 = vmatpush1.bf16.msra.mxu0 0
    %421 = vmatprep.subr.bf16.mxu0 0
    %422 = vmatpush1.bf16.msra.mxu0 0
    %423 = vmatprep.subr.bf16.mxu0 0
    %424 = vmatpush1.bf16.msra.mxu0 0
    %425 = vmatprep.subr.bf16.mxu0 0
    %426 = vmatpush1.bf16.msra.mxu0 0
    %427 = vmatprep.subr.bf16.mxu0 0
    %428 = vmatpush1.bf16.msra.mxu0 0
    %429 = vmatprep.subr.bf16.mxu0 0
    %430 = vmatpush1.bf16.msra.mxu0 0
    %431 = vmatprep.subr.bf16.mxu0 0
    %432 = vmatpush1.bf16.msra.mxu0 0
    %433 = vmatprep.subr.bf16.mxu0 0
    %434 = vmatpush1.bf16.msra.mxu0 0
    %435 = vmatprep.mubr.bf16.mxu0 0
    %436 = vmatmul.mubr.bf16.gmra.mrb[0].mxu0 %v395
    %v437 = vpop.f32.mrb[0].mxu0
    %v438 = vadd.f32 %v342, %v437
    %v439 = vpop.f32.mrb[0].mxu0
    %v440 = vpop.f32.mrb[0].mxu0
    %v441 = vadd.f32 %v347, %v440
    %v442 = vpop.f32.mrb[0].mxu0
    %443 = vmatprep.mubr.bf16.mxu0 0
    %444 = vmatmul.mubr.bf16.gmra.mrb[0].mxu0 %v396
    %v445 = vpop.f32.mrb[0].mxu0
    %v446 = vadd.f32 %v352, %v445
    %v447 = vpop.f32.mrb[0].mxu0
    %v448 = vpop.f32.mrb[0].mxu0
    %v449 = vadd.f32 %v357, %v448
    %v450 = vpop.f32.mrb[0].mxu0
    %451 = vmatprep.mubr.bf16.mxu0 0
    %452 = vmatmul.mubr.bf16.gmra.mrb[0].mxu0 %v397
    %v453 = vpop.f32.mrb[0].mxu0
    %v454 = vadd.f32 %v362, %v453
    %v455 = vpop.f32.mrb[0].mxu0
    %v456 = vpop.f32.mrb[0].mxu0
    %v457 = vadd.f32 %v367, %v456
    %v458 = vpop.f32.mrb[0].mxu0
    %459 = vmatprep.mubr.bf16.mxu0 0
    %460 = vmatmul.mubr.bf16.gmra.mrb[0].mxu0 %v398
    %v461 = vpop.f32.mrb[0].mxu0
    %v462 = vadd.f32 %v372, %v461
    %v463 = vpop.f32.mrb[0].mxu0
    %v464 = vpop.f32.mrb[0].mxu0
    %v465 = vadd.f32 %v377, %v464
    %v466 = vpop.f32.mrb[0].mxu0
    %467 = vdwg.mxu0
    %v468 = vpack.c.bf16 %v441, %v438
    %v469 = vpack.c.bf16 %v449, %v446
    %v470 = vpack.c.bf16 %v457, %v454
    %v471 = vpack.c.bf16 %v465, %v462
    %v472 = vmax.bf16 %v468, 0
    %v473 = vmax.bf16 %v469, 0
    %v474 = vmax.bf16 %v470, 0
    %v475 = vmax.bf16 %v471, 0
    %v476 = vld [vmem:[%s5] sm:$0x1]
    %v477 = vld [vmem:[%s6] sm:$0x3]
    %479 = vset.pattern.permute.xlu0 0
    %480 = vperm.xlu0 %479, %v477
    %v481 = vpop.permute.xlu0 %480
    %vm483 = vcmask 523264
    %v485 = vsel %vm483, %v476, 0
    %487 = vmatprep.subr.bf16.mxu0 0
    %488 = vmatpush1.bf16.msra.mxu0 %v472
    %489 = vmatprep.subr.bf16.mxu0 0
    %490 = vmatpush1.bf16.msra.mxu0 %v473
    %491 = vmatprep.subr.bf16.mxu0 0
    %492 = vmatpush1.bf16.msra.mxu0 %v474
    %493 = vmatprep.subr.bf16.mxu0 0
    %494 = vmatpush1.bf16.msra.mxu0 %v475
    %495 = vmatprep.subr.bf16.mxu0 0
    %496 = vmatpush1.bf16.msra.mxu0 0
    %497 = vmatprep.subr.bf16.mxu0 0
    %498 = vmatpush1.bf16.msra.mxu0 0
    %499 = vmatprep.subr.bf16.mxu0 0
    %500 = vmatpush1.bf16.msra.mxu0 0
    %501 = vmatprep.subr.bf16.mxu0 0
    %502 = vmatpush1.bf16.msra.mxu0 0
    %503 = vmatprep.subr.bf16.mxu0 0
    %504 = vmatpush1.bf16.msra.mxu0 0
    %505 = vmatprep.subr.bf16.mxu0 0
    %506 = vmatpush1.bf16.msra.mxu0 0
    %507 = vmatprep.subr.bf16.mxu0 0
    %508 = vmatpush1.bf16.msra.mxu0 0
    %509 = vmatprep.subr.bf16.mxu0 0
    %510 = vmatpush1.bf16.msra.mxu0 0
    %511 = vmatprep.subr.bf16.mxu0 0
    %512 = vmatpush1.bf16.msra.mxu0 0
    %513 = vmatprep.subr.bf16.mxu0 0
    %514 = vmatpush1.bf16.msra.mxu0 0
    %515 = vmatprep.subr.bf16.mxu0 0
    %516 = vmatpush1.bf16.msra.mxu0 0
    %517 = vmatprep.subr.bf16.mxu0 0
    %518 = vmatpush1.bf16.msra.mxu0 0
    %519 = vmatprep.mubr.bf16.mxu0 0
    %520 = vmatmul.mubr.bf16.gmra.mrb[0].mxu0 %v485
    %v521 = vpop.f32.mrb[0].mxu0
    %v522 = vadd.f32 %v481, %v521
    %v523 = vpop.f32.mrb[0].mxu0
    %v524 = vpop.f32.mrb[0].mxu0
    %v525 = vpop.f32.mrb[0].mxu0
    %526 = vdwg.mxu0
    %v527 = vpack.c.bf16 %v522, %v522
    %528 = vst [vmem:[#allocation2] sm:$0x1] %v527
    // Predicated region
    $region30: #{tpu_custom_call.1} parent=1 // pred_check
      _
    $region31: #{tpu_custom_call.1} parent=1 // pred_check_branch
      %530 = sbr.rel (0) target = $region33
    $region32: #{tpu_custom_call.1} parent=1 // pred_region
      %s532 = ssub.s32 16, 16
      %533 = vsyncadd [#allocation3], %s532
      %s535 = sshll.u32 [#allocation2], 4
      %s536 = int_to_ptr.vmem [resolvable:$true] %s535
      %538 = dma.vmem_to_hbm [thread:$0]  %s536, 16, %s7, [#allocation3]
    $region33: #{tpu_custom_call.1} parent=1 // pred_fallthru
      _
    // Predicated region
    $region34: #{tpu_custom_call.1} parent=1 // pred_check
      _
    $region35: #{tpu_custom_call.1} parent=1 // pred_check_branch
      %540 = sbr.rel (0) target = $region37
    $region36: #{tpu_custom_call.1} parent=1 // pred_region
      %541 = dma.done [#allocation3], 16
    $region37: #{tpu_custom_call.1} parent=1 // pred_fallthru
      _
    %542 = vsyncpa [#allocation3], 1

</llo_original>
